<compile_context>
chip_gen: v7x
topology: tpu7x:2x2x1
jax: 0.10.0
libtpu: 0.0.40
codegen_flags: <defaults>
</compile_context>

<pallas_src>
import jax
import jax.numpy as jnp
from jax.experimental import pallas as pl
from jax.experimental.pallas import tpu as pltpu

_LANE = 128
_SUBLANE = 8
_NEG_INF = -1e30  # finite "minus infinity" for padded action logits


def _round_up(x, m):
    return ((x + m - 1) // m) * m


def _policy_kernel(x_ref, w1_ref, b1_ref, w2_ref, b2_ref, out_ref):
    # fc1 + ReLU  (MXU matmul with f32 accumulation; bias-add + max on the VPU)
    h = jnp.dot(x_ref[...], w1_ref[...], preferred_element_type=jnp.float32)
    h = jnp.maximum(h + b1_ref[...], 0.0)

    # fc2 (MXU matmul)
    logits = jnp.dot(h, w2_ref[...], preferred_element_type=jnp.float32) + b2_ref[...]

    # Numerically-stable softmax over the (padded) action axis.
    # Padded lanes have a -1e30 bias -> exp underflows to 0 and they neither
    # shift the max nor contribute to the denominator.
    m = jnp.max(logits, axis=1, keepdims=True)          # XLU
    e = jnp.exp(logits - m)                              # EUP
    denom = jnp.sum(e, axis=1, keepdims=True)            # XLU
    inv = pl.reciprocal(denom, approx=True)              # EUP (vrcp, ~free slot)
    out_ref[...] = (e * inv).astype(out_ref.dtype)


def _a2c_policy_forward(state, w1, b1, w2, b2):
    """state: [B, S] f32; w1: [S, H]; b1: [1, H]; w2: [H, A]; b2: [1, A]."""
    B, S = state.shape
    H = w1.shape[1]
    A = w2.shape[1]

    # Lane-dense padding of hidden / action axes (128-lane vregs, MXU width).
    H_pad = _round_up(H, _LANE)
    A_pad = _round_up(A, _LANE)

    # Batch tiling: large row tiles amortize the ~0.35us per-grid-step overhead
    # and let the input/output DMAs double-buffer against MXU work.
    # 512 rows x 128 lanes x 4 B = 256 KiB per output buffer -> comfortably
    # inside even v7x's 64 MiB VMEM with double buffering plus resident weights.
    block_b = 512 if B >= 512 else _round_up(max(B, 1), _SUBLANE)
    B_pad = _round_up(B, block_b)

    x = jnp.pad(state, ((0, B_pad - B), (0, 0)))
    w1p = jnp.pad(w1, ((0, 0), (0, H_pad - H)))
    b1p = jnp.pad(b1, ((0, 0), (0, H_pad - H)))
    w2p = jnp.pad(w2, ((0, H_pad - H), (0, A_pad - A)))
    b2p = jnp.pad(b2, ((0, 0), (0, A_pad - A)), constant_values=_NEG_INF)

    grid = (B_pad // block_b,)

    flops = 2 * B_pad * (S * H_pad + H_pad * A_pad)
    bytes_accessed = 4 * (
        B_pad * S                       # streamed activations
        + S * H_pad + H_pad             # resident fc1 weights/bias
        + H_pad * A_pad + A_pad         # resident fc2 weights/bias
        + B_pad * A_pad                 # output probabilities
    )

    out = pl.pallas_call(
        _policy_kernel,
        out_shape=jax.ShapeDtypeStruct((B_pad, A_pad), jnp.float32),
        grid_spec=pltpu.PrefetchScalarGridSpec(
            num_scalar_prefetch=0,
            grid=grid,
            in_specs=[
                # activations: stream one batch tile per grid step
                pl.BlockSpec((block_b, S), lambda i: (i, 0)),
                # weights / biases: constant index_map -> stay VMEM-resident
                pl.BlockSpec((S, H_pad), lambda i: (0, 0)),
                pl.BlockSpec((1, H_pad), lambda i: (0, 0)),
                pl.BlockSpec((H_pad, A_pad), lambda i: (0, 0)),
                pl.BlockSpec((1, A_pad), lambda i: (0, 0)),
            ],
            out_specs=pl.BlockSpec((block_b, A_pad), lambda i: (i, 0)),
        ),
        compiler_params=pltpu.CompilerParams(
            # batch tiles are independent -> shard across TensorCores (v7x)
            dimension_semantics=("parallel",),
            vmem_limit_bytes=32 * 1024 * 1024,
        ),
        cost_estimate=pl.CostEstimate(
            flops=flops,
            transcendentals=B_pad * A_pad,
            bytes_accessed=bytes_accessed,
        ),
    )(x, w1p, b1p, w2p, b2p)

    return out[:B, :A]


a2c_policy_forward = jax.jit(_a2c_policy_forward)


def init_params(key, state_size, action_size, hidden_dim):
    """Deterministic init mimicking nn.Linear default (uniform +/- 1/sqrt(fan_in))."""
    k1, k2, k3, k4 = jax.random.split(key, 4)
    bound1 = 1.0 / jnp.sqrt(jnp.float32(state_size))
    bound2 = 1.0 / jnp.sqrt(jnp.float32(hidden_dim))
    w1 = jax.random.uniform(k1, (state_size, hidden_dim), jnp.float32, -bound1, bound1)
    b1 = jax.random.uniform(k2, (1, hidden_dim), jnp.float32, -bound1, bound1)
    w2 = jax.random.uniform(k3, (hidden_dim, action_size), jnp.float32, -bound2, bound2)
    b2 = jax.random.uniform(k4, (1, action_size), jnp.float32, -bound2, bound2)
    return w1, b1, w2, b2


def _reference_forward(state, w1, b1, w2, b2):
    h = jnp.maximum(state @ w1 + b1, 0.0)
    return jax.nn.softmax(h @ w2 + b2, axis=1)


if __name__ == "__main__":
    key = jax.random.PRNGKey(0)
    state_size = 16
    hidden_dim = 32
    action_size = 8

    k_params, k_small, k_big = jax.random.split(key, 3)
    w1, b1, w2, b2 = init_params(k_params, state_size, action_size, hidden_dim)

    # small batch (single grid step)
    state_small = jax.random.normal(k_small, (8, state_size), jnp.float32)
    probs_small = jax.block_until_ready(
        a2c_policy_forward(state_small, w1, b1, w2, b2))

    # larger batch exercising the multi-tile batch grid (2 x 512-row tiles)
    state_big = jax.random.normal(k_big, (1024, state_size), jnp.float32)
    probs_big = jax.block_until_ready(
        a2c_policy_forward(state_big, w1, b1, w2, b2))

    ok = True
    for state, probs in ((state_small, probs_small), (state_big, probs_big)):
        ref = _reference_forward(state, w1, b1, w2, b2)
        ok &= probs.shape == (state.shape[0], action_size)
        # approx reciprocal (EUP vrcp) has ~1e-3 relative error
        ok &= bool(jnp.all(jnp.abs(probs - ref) < 2e-3))
        row_sums = jnp.sum(probs, axis=1)
        ok &= bool(jnp.all(jnp.abs(row_sums - 1.0) < 5e-3))

    assert ok
    print("KERNEL_OK")
</pallas_src>

<mosaic_0001>
module attributes {stable_mosaic.version = 11 : i64} {
  func.func @_policy_kernel(%arg0: i32, %arg1: memref<8x16xf32, #tpu.memory_space<vmem>>, %arg2: memref<16x128xf32, #tpu.memory_space<vmem>>, %arg3: memref<1x128xf32, #tpu.memory_space<vmem>>, %arg4: memref<128x128xf32, #tpu.memory_space<vmem>>, %arg5: memref<1x128xf32, #tpu.memory_space<vmem>>, %arg6: memref<8x128xf32, #tpu.memory_space<vmem>>) attributes {dimension_semantics = [#tpu.dimension_semantics<parallel>], iteration_bounds = array<i64: 1>, scalar_prefetch = 0 : i64, scratch_operands = 0 : i64, tpu.core_type = #tpu.core_type<tc>, window_params = [{transform_indices = @transform_0, window_bounds = array<i64: 8, 16>}, {pipeline_mode = #tpu.pipeline_mode<synchronous>, transform_indices = @transform_1, window_bounds = array<i64: 16, 128>}, {pipeline_mode = #tpu.pipeline_mode<synchronous>, transform_indices = @transform_2, window_bounds = array<i64: 1, 128>}, {pipeline_mode = #tpu.pipeline_mode<synchronous>, transform_indices = @transform_3, window_bounds = array<i64: 128, 128>}, {pipeline_mode = #tpu.pipeline_mode<synchronous>, transform_indices = @transform_4, window_bounds = array<i64: 1, 128>}, {transform_indices = @transform_5, window_bounds = array<i64: 8, 128>}]} {
    %c0 = arith.constant 0 : index
    %c0_0 = arith.constant 0 : index
    %0 = vector.load %arg1[%c0, %c0_0] : memref<8x16xf32, #tpu.memory_space<vmem>>, vector<8x16xf32>
    %c0_1 = arith.constant 0 : index
    %c0_2 = arith.constant 0 : index
    %1 = vector.load %arg2[%c0_1, %c0_2] : memref<16x128xf32, #tpu.memory_space<vmem>>, vector<16x128xf32>
    %cst = arith.constant dense<0.000000e+00> : vector<8x128xf32>
    %2 = tpu.matmul %0, %1, %cst {dimension_numbers = #tpu.dot_dimension_numbers<[1], [0], [0], [1], [0, 0, 1, 1], [], []>} : vector<8x16xf32>, vector<16x128xf32>, vector<8x128xf32> -> vector<8x128xf32>
    %c0_3 = arith.constant 0 : index
    %c0_4 = arith.constant 0 : index
    %3 = vector.load %arg3[%c0_3, %c0_4] : memref<1x128xf32, #tpu.memory_space<vmem>>, vector<1x128xf32>
    %4 = vector.broadcast %3 : vector<1x128xf32> to vector<8x128xf32>
    %5 = arith.addf %2, %4 : vector<8x128xf32>
    %cst_5 = arith.constant 0.000000e+00 : f32
    %6 = vector.broadcast %cst_5 : f32 to vector<8x128xf32>
    %7 = arith.maximumf %5, %6 : vector<8x128xf32>
    %c0_6 = arith.constant 0 : index
    %c0_7 = arith.constant 0 : index
    %8 = vector.load %arg4[%c0_6, %c0_7] : memref<128x128xf32, #tpu.memory_space<vmem>>, vector<128x128xf32>
    %cst_8 = arith.constant dense<0.000000e+00> : vector<8x128xf32>
    %9 = tpu.matmul %7, %8, %cst_8 {dimension_numbers = #tpu.dot_dimension_numbers<[1], [0], [0], [1], [0, 0, 1, 1], [], []>} : vector<8x128xf32>, vector<128x128xf32>, vector<8x128xf32> -> vector<8x128xf32>
    %c0_9 = arith.constant 0 : index
    %c0_10 = arith.constant 0 : index
    %10 = vector.load %arg5[%c0_9, %c0_10] : memref<1x128xf32, #tpu.memory_space<vmem>>, vector<1x128xf32>
    %11 = vector.broadcast %10 : vector<1x128xf32> to vector<8x128xf32>
    %12 = arith.addf %9, %11 : vector<8x128xf32>
    %cst_11 = arith.constant dense<0xFF800000> : vector<8xf32>
    %13 = vector.multi_reduction <maximumf>, %12, %cst_11 [1] : vector<8x128xf32> to vector<8xf32>
    %14 = vector.shape_cast %13 : vector<8xf32> to vector<8x1xf32>
    %15 = vector.broadcast %14 : vector<8x1xf32> to vector<8x128xf32>
    %16 = arith.subf %12, %15 : vector<8x128xf32>
    %17 = math.exp %16 : vector<8x128xf32>
    %cst_12 = arith.constant dense<0.000000e+00> : vector<8xf32>
    %18 = vector.multi_reduction <add>, %17, %cst_12 [1] : vector<8x128xf32> to vector<8xf32>
    %19 = vector.shape_cast %18 : vector<8xf32> to vector<8x1xf32>
    %20 = tpu.reciprocal %19 {approx = true} : vector<8x1xf32> -> vector<8x1xf32>
    %21 = vector.broadcast %20 : vector<8x1xf32> to vector<8x128xf32>
    %22 = arith.mulf %17, %21 : vector<8x128xf32>
    %c0_13 = arith.constant 0 : index
    %c0_14 = arith.constant 0 : index
    %23 = vector.load %arg6[%c0_13, %c0_14] : memref<8x128xf32, #tpu.memory_space<vmem>>, vector<8x128xf32>
    tpu.vector_store %arg6[%c0_13, %c0_14], %22 {strides = array<i32>} : memref<8x128xf32, #tpu.memory_space<vmem>>, vector<8x128xf32>,
    return
  }
  func.func @transform_0(%arg0: i32) -> (i32, i32) {
    %c0_i32 = arith.constant 0 : i32
    %c0_i32_0 = arith.constant 0 : i32
    return %arg0, %c0_i32 : i32, i32
  }
  func.func @transform_1(%arg0: i32) -> (i32, i32) {
    %c0_i32 = arith.constant 0 : i32
    %c0_i32_0 = arith.constant 0 : i32
    %c0_i32_1 = arith.constant 0 : i32
    return %c0_i32, %c0_i32_0 : i32, i32
  }
  func.func @transform_2(%arg0: i32) -> (i32, i32) {
    %c0_i32 = arith.constant 0 : i32
    %c0_i32_0 = arith.constant 0 : i32
    %c0_i32_1 = arith.constant 0 : i32
    return %c0_i32, %c0_i32_0 : i32, i32
  }
  func.func @transform_3(%arg0: i32) -> (i32, i32) {
    %c0_i32 = arith.constant 0 : i32
    %c0_i32_0 = arith.constant 0 : i32
    %c0_i32_1 = arith.constant 0 : i32
    return %c0_i32, %c0_i32_0 : i32, i32
  }
  func.func @transform_4(%arg0: i32) -> (i32, i32) {
    %c0_i32 = arith.constant 0 : i32
    %c0_i32_0 = arith.constant 0 : i32
    %c0_i32_1 = arith.constant 0 : i32
    return %c0_i32, %c0_i32_0 : i32, i32
  }
  func.func @transform_5(%arg0: i32) -> (i32, i32) {
    %c0_i32 = arith.constant 0 : i32
    %c0_i32_0 = arith.constant 0 : i32
    return %arg0, %c0_i32 : i32, i32
  }
}

</mosaic_0001>

<llo_original>
// kernel: _a2c_policy_forward.1
$region0: #{_a2c_policy_forward.1}
  #allocation0 [shape = 'u32[]', space=smem, size = 0x4, offset = 0x4, fixed_abs, tag = 'smem constant byte address 0x4 - core index']
  #allocation1 [shape = 'u32[144,128]{1,0:T(1,128)}', space=vmem, size = 0x12000, scoped, tag = 'internal scratch']
  %s0 = inlined_call_operand.vmem [shape: f32[8,16], index: 0, kind: input, shape index: {}]
  %s1 = inlined_call_operand.vmem [shape: f32[16,128], index: 1, kind: input, shape index: {}]
  %s2 = inlined_call_operand.vmem [shape: f32[1,128], index: 2, kind: input, shape index: {}]
  %s3 = inlined_call_operand.vmem [shape: f32[128,128], index: 3, kind: input, shape index: {}]
  %s4 = inlined_call_operand.vmem [shape: f32[1,128], index: 4, kind: input, shape index: {}]
  %s5 = inlined_call_operand.hbm [shape: f32[8,128], index: 5, kind: output, shape index: {}]
  %s6 = sld [smem:[#allocation0]]
  $region30: #{_a2c_policy_forward.1} parent=0
    _
  %s8 = ssub.s32 1, %s6
  %s9 = scalar_select 0, %s8, %s6
  $region1: #{_a2c_policy_forward.1} parent=0
    #allocation2 [shape = 'u8[4096]{0}', space=vmem, size = 0x1000, scoped, tag = 'output window, operand 0, single buffered']
    #allocation3 [shape = 's32[1]{0}', space=sflag, size = 0x4, scoped, tag = 'scoped memory for _a2c_policy_forward.1']
    %10 = vsyncpa [#allocation3], 0
    // Predicated region
    $region2: #{_a2c_policy_forward.1} parent=1 // pred_check
      _
    $region3: #{_a2c_policy_forward.1} parent=1 // pred_check_branch
      %12 = sbr.rel (0) target = $region5
    $region4: #{_a2c_policy_forward.1} parent=1 // pred_region
      _
    $region5: #{_a2c_policy_forward.1} parent=1 // pred_fallthru
      _
    // Predicated region
    $region6: #{_a2c_policy_forward.1} parent=1 // pred_check
      _
    $region7: #{_a2c_policy_forward.1} parent=1 // pred_check_branch
      %14 = sbr.rel (0) target = $region9
    $region8: #{_a2c_policy_forward.1} parent=1 // pred_region
      _
    $region9: #{_a2c_policy_forward.1} parent=1 // pred_fallthru
      _
    // Predicated region
    $region10: #{_a2c_policy_forward.1} parent=1 // pred_check
      _
    $region11: #{_a2c_policy_forward.1} parent=1 // pred_check_branch
      %16 = sbr.rel (0) target = $region13
    $region12: #{_a2c_policy_forward.1} parent=1 // pred_region
      _
    $region13: #{_a2c_policy_forward.1} parent=1 // pred_fallthru
      _
    // Predicated region
    $region14: #{_a2c_policy_forward.1} parent=1 // pred_check
      _
    $region15: #{_a2c_policy_forward.1} parent=1 // pred_check_branch
      %18 = sbr.rel (0) target = $region17
    $region16: #{_a2c_policy_forward.1} parent=1 // pred_region
      _
    $region17: #{_a2c_policy_forward.1} parent=1 // pred_fallthru
      _
    // Predicated region
    $region18: #{_a2c_policy_forward.1} parent=1 // pred_check
      _
    $region19: #{_a2c_policy_forward.1} parent=1 // pred_check_branch
      %20 = sbr.rel (0) target = $region21
    $region20: #{_a2c_policy_forward.1} parent=1 // pred_region
      _
    $region21: #{_a2c_policy_forward.1} parent=1 // pred_fallthru
      _
    %v21 = vld [vmem:[%s0] sm:$0xff]
    %v22 = vld [vmem:[%s1] sm:$0xff]
    %v23 = vld [vmem:[%s1 + $0x8] sm:$0xff]
    %v24 = vld [vmem:[%s2] sm:$0x1]
    %v26 = vlaneseq
    %v27 = vshrl.u32 %v26, 7
    %v28 = vsub.s32 0, %v27
    %v29 = vrot.slane %v24, %v28
    %vm31 = vcmask 130048
    %v33 = vsel %vm31, %v21, 0
    %35 = vmatprep.subr.mxu0 0.0
    %36 = vmatpush1.msra.mxu0 %v22
    %37 = vmatprep.subr.mxu0 0.0
    %38 = vmatpush1.msra.mxu0 %v23
    %39 = vmatprep.subr.mxu0 0.0
    %40 = vmatpush1.msra.mxu0 0.0
    %41 = vmatprep.subr.mxu0 0.0
    %42 = vmatpush1.msra.mxu0 0.0
    %43 = vmatprep.subr.mxu0 0.0
    %44 = vmatpush1.msra.mxu0 0.0
    %45 = vmatprep.subr.mxu0 0.0
    %46 = vmatpush1.msra.mxu0 0.0
    %47 = vmatprep.subr.mxu0 0.0
    %48 = vmatpush1.msra.mxu0 0.0
    %49 = vmatprep.subr.mxu0 0.0
    %50 = vmatpush1.msra.mxu0 0.0
    %51 = vmatprep.subr.mxu0 0.0
    %52 = vmatpush1.msra.mxu0 0.0
    %53 = vmatprep.subr.mxu0 0.0
    %54 = vmatpush1.msra.mxu0 0.0
    %55 = vmatprep.subr.mxu0 0.0
    %56 = vmatpush1.msra.mxu0 0.0
    %57 = vmatprep.subr.mxu0 0.0
    %58 = vmatpush1.msra.mxu0 0.0
    %59 = vmatprep.subr.mxu0 0.0
    %60 = vmatpush1.msra.mxu0 0.0
    %61 = vmatprep.subr.mxu0 0.0
    %62 = vmatpush1.msra.mxu0 0.0
    %63 = vmatprep.subr.mxu0 0.0
    %64 = vmatpush1.msra.mxu0 0.0
    %65 = vmatprep.subr.mxu0 0.0
    %66 = vmatpush1.msra.mxu0 0.0
    %67 = vmatprep.subr.mxu0 0.0
    %68 = vmatpush1.msra.mxu0 0.0
    %69 = vmatprep.subr.mxu0 0.0
    %70 = vmatpush1.msra.mxu0 0.0
    %71 = vmatprep.subr.mxu0 0.0
    %72 = vmatpush1.msra.mxu0 0.0
    %73 = vmatprep.subr.mxu0 0.0
    %74 = vmatpush1.msra.mxu0 0.0
    %75 = vmatprep.subr.mxu0 0.0
    %76 = vmatpush1.msra.mxu0 0.0
    %77 = vmatprep.subr.mxu0 0.0
    %78 = vmatpush1.msra.mxu0 0.0
    %79 = vmatprep.subr.mxu0 0.0
    %80 = vmatpush1.msra.mxu0 0.0
    %81 = vmatprep.subr.mxu0 0.0
    %82 = vmatpush1.msra.mxu0 0.0
    %83 = vmatprep.subr.mxu0 0.0
    %84 = vmatpush1.msra.mxu0 0.0
    %85 = vmatprep.subr.mxu0 0.0
    %86 = vmatpush1.msra.mxu0 0.0
    %87 = vmatprep.subr.mxu0 0.0
    %88 = vmatpush1.msra.mxu0 0.0
    %89 = vmatprep.subr.mxu0 0.0
    %90 = vmatpush1.msra.mxu0 0.0
    %91 = vmatprep.subr.mxu0 0.0
    %92 = vmatpush1.msra.mxu0 0.0
    %93 = vmatprep.subr.mxu0 0.0
    %94 = vmatpush1.msra.mxu0 0.0
    %95 = vmatprep.subr.mxu0 0.0
    %96 = vmatpush1.msra.mxu0 0.0
    %97 = vmatprep.subr.mxu0 0.0
    %98 = vmatpush1.msra.mxu0 0.0
    %99 = vmatprep.mubr.f32.mxu0 0.0
    %100 = vmatmul.mubr.f32.gmra.mrb[0].mxu0 %v33
    %v101 = vpop.f32.mrb[0].mxu0
    %v102 = vadd.f32 %v29, %v101
    %v103 = vpop.f32.mrb[0].mxu0
    %104 = vdwg.mxu0
    %v105 = vmax.f32 %v102, 0.0
    %v106 = vld [vmem:[%s3] sm:$0xff]
    %v107 = vld [vmem:[%s3 + $0x8] sm:$0xff]
    %v108 = vld [vmem:[%s3 + $0x10] sm:$0xff]
    %v109 = vld [vmem:[%s3 + $0x18] sm:$0xff]
    %v110 = vld [vmem:[%s3 + $0x20] sm:$0xff]
    %v111 = vld [vmem:[%s3 + $0x28] sm:$0xff]
    %v112 = vld [vmem:[%s3 + $0x30] sm:$0xff]
    %v113 = vld [vmem:[%s3 + $0x38] sm:$0xff]
    %v114 = vld [vmem:[%s3 + $0x40] sm:$0xff]
    %v115 = vld [vmem:[%s3 + $0x48] sm:$0xff]
    %v116 = vld [vmem:[%s3 + $0x50] sm:$0xff]
    %v117 = vld [vmem:[%s3 + $0x58] sm:$0xff]
    %v118 = vld [vmem:[%s3 + $0x60] sm:$0xff]
    %v119 = vld [vmem:[%s3 + $0x68] sm:$0xff]
    %v120 = vld [vmem:[%s3 + $0x70] sm:$0xff]
    %v121 = vld [vmem:[%s3 + $0x78] sm:$0xff]
    %v122 = vld [vmem:[%s4] sm:$0x1]
    %v124 = vlaneseq
    %v125 = vshrl.u32 %v124, 7
    %v126 = vsub.s32 0, %v125
    %v127 = vrot.slane %v122, %v126
    %129 = vmatprep.subr.mxu0 0.0
    %130 = vmatpush1.msra.mxu0 %v106
    %131 = vmatprep.subr.mxu0 0.0
    %132 = vmatpush1.msra.mxu0 %v107
    %133 = vmatprep.subr.mxu0 0.0
    %134 = vmatpush1.msra.mxu0 %v108
    %135 = vmatprep.subr.mxu0 0.0
    %136 = vmatpush1.msra.mxu0 %v109
    %137 = vmatprep.subr.mxu0 0.0
    %138 = vmatpush1.msra.mxu0 %v110
    %139 = vmatprep.subr.mxu0 0.0
    %140 = vmatpush1.msra.mxu0 %v111
    %141 = vmatprep.subr.mxu0 0.0
    %142 = vmatpush1.msra.mxu0 %v112
    %143 = vmatprep.subr.mxu0 0.0
    %144 = vmatpush1.msra.mxu0 %v113
    %145 = vmatprep.subr.mxu0 0.0
    %146 = vmatpush1.msra.mxu0 %v114
    %147 = vmatprep.subr.mxu0 0.0
    %148 = vmatpush1.msra.mxu0 %v115
    %149 = vmatprep.subr.mxu0 0.0
    %150 = vmatpush1.msra.mxu0 %v116
    %151 = vmatprep.subr.mxu0 0.0
    %152 = vmatpush1.msra.mxu0 %v117
    %153 = vmatprep.subr.mxu0 0.0
    %154 = vmatpush1.msra.mxu0 %v118
    %155 = vmatprep.subr.mxu0 0.0
    %156 = vmatpush1.msra.mxu0 %v119
    %157 = vmatprep.subr.mxu0 0.0
    %158 = vmatpush1.msra.mxu0 %v120
    %159 = vmatprep.subr.mxu0 0.0
    %160 = vmatpush1.msra.mxu0 %v121
    %161 = vmatprep.subr.mxu0 0.0
    %162 = vmatpush1.msra.mxu0 0.0
    %163 = vmatprep.subr.mxu0 0.0
    %164 = vmatpush1.msra.mxu0 0.0
    %165 = vmatprep.subr.mxu0 0.0
    %166 = vmatpush1.msra.mxu0 0.0
    %167 = vmatprep.subr.mxu0 0.0
    %168 = vmatpush1.msra.mxu0 0.0
    %169 = vmatprep.subr.mxu0 0.0
    %170 = vmatpush1.msra.mxu0 0.0
    %171 = vmatprep.subr.mxu0 0.0
    %172 = vmatpush1.msra.mxu0 0.0
    %173 = vmatprep.subr.mxu0 0.0
    %174 = vmatpush1.msra.mxu0 0.0
    %175 = vmatprep.subr.mxu0 0.0
    %176 = vmatpush1.msra.mxu0 0.0
    %177 = vmatprep.subr.mxu0 0.0
    %178 = vmatpush1.msra.mxu0 0.0
    %179 = vmatprep.subr.mxu0 0.0
    %180 = vmatpush1.msra.mxu0 0.0
    %181 = vmatprep.subr.mxu0 0.0
    %182 = vmatpush1.msra.mxu0 0.0
    %183 = vmatprep.subr.mxu0 0.0
    %184 = vmatpush1.msra.mxu0 0.0
    %185 = vmatprep.subr.mxu0 0.0
    %186 = vmatpush1.msra.mxu0 0.0
    %187 = vmatprep.subr.mxu0 0.0
    %188 = vmatpush1.msra.mxu0 0.0
    %189 = vmatprep.subr.mxu0 0.0
    %190 = vmatpush1.msra.mxu0 0.0
    %191 = vmatprep.subr.mxu0 0.0
    %192 = vmatpush1.msra.mxu0 0.0
    %193 = vmatprep.mubr.f32.mxu0 0.0
    %194 = vmatmul.mubr.f32.gmra.mrb[0].mxu0 %v105
    %v195 = vpop.f32.mrb[0].mxu0
    %v196 = vadd.f32 %v127, %v195
    %v197 = vpop.f32.mrb[0].mxu0
    %198 = vdwg.mxu0
    %199 = vmax.xlane.f32.xlu0 %v196
    %v200 = vpop.xlane.xlu0 %199
    %v201 = vsub.f32 %v196, %v200
    %v202 = vmul.f32 %v201, 1.442695
    %v203 = vpow.pop %v202
    %204 = vadd.xlane.f32.xlu0 %v203
    %v205 = vpop.xlane.xlu0 %204
    %v206 = vrcp.pop %v205
    %v207 = vmul.f32 %v203, %v206
    %208 = vst [vmem:[#allocation2] sm:$0xff] %v207
    // Predicated region
    $region22: #{_a2c_policy_forward.1} parent=1 // pred_check
      _
    $region23: #{_a2c_policy_forward.1} parent=1 // pred_check_branch
      %210 = sbr.rel (0) target = $region25
    $region24: #{_a2c_policy_forward.1} parent=1 // pred_region
      %s212 = ssub.s32 128, 128
      %213 = vsyncadd [#allocation3], %s212
      %s215 = sshll.u32 [#allocation2], 4
      %s216 = int_to_ptr.vmem [resolvable:$true] %s215
      %218 = dma.vmem_to_hbm [thread:$0]  %s216, 128, %s5, [#allocation3]
    $region25: #{_a2c_policy_forward.1} parent=1 // pred_fallthru
      _
    // Predicated region
    $region26: #{_a2c_policy_forward.1} parent=1 // pred_check
      _
    $region27: #{_a2c_policy_forward.1} parent=1 // pred_check_branch
      %220 = sbr.rel (0) target = $region29
    $region28: #{_a2c_policy_forward.1} parent=1 // pred_region
      %221 = dma.done [#allocation3], 128
    $region29: #{_a2c_policy_forward.1} parent=1 // pred_fallthru
      _
    %222 = vsyncpa [#allocation3], 1

</llo_original>
